<compile_context>
chip_gen: v6e
topology: v6e:2x2x1
jax: 0.10.0
libtpu: 0.0.40
codegen_flags: <defaults>
</compile_context>

<pallas_src>
import functools

import jax
import jax.numpy as jnp
from jax import lax
from jax.experimental import pallas as pl
from jax.experimental.pallas import tpu as pltpu

_NEG = -1e30   # large finite negative for padded class logits (exp underflows to 0)
_LANE = 128


def _round_up(n, m):
    return ((n + m - 1) // m) * m


def _multihead_kernel(x_ref, wc_ref, bc_ref, o_ref, *, compute_dtype):
    # x_ref: (C, Wt) channel-major slice of the activations (H==1 squeezed).
    # Im2Seq is fused here: the transposed-LHS contraction consumes the NCHW
    # layout directly, so no wrapper-side transpose / extra HBM pass.
    x = x_ref[...]
    if compute_dtype is not None:
        x = x.astype(compute_dtype)                       # in-vreg cast, free
    # Fused Neck-FC + CTC-FC: single MXU matmul (wc = w1 @ w2, folded once).
    logits = lax.dot_general(
        x, wc_ref[...],
        dimension_numbers=(((0,), (0,)), ((), ())),       # contract C with C -> (Wt, ncp)
        preferred_element_type=jnp.float32,
        precision=lax.Precision.HIGHEST)
    logits = logits + bc_ref[...]                         # f32 bias (padded lanes = -1e30)
    # CTC eval-mode softmax over the lane-dense 128-padded class axis.
    m = jnp.max(logits, axis=-1, keepdims=True)
    e = jnp.exp(logits - m)
    denom = jnp.sum(e, axis=-1, keepdims=True)
    o_ref[...] = (e / denom).astype(o_ref.dtype)          # exact divide (mem-bound kernel)


def fold_ctc_params(params):
    """Fold Neck-FC and CTC-FC (no nonlinearity in between) and pad classes to 128.

    Call once (hoisted out of the per-call path). The fold is done in f32 at
    HIGHEST precision, before any optional bf16 cast of the folded weight.
    Returns (wc_padded (C, 128k), bc_padded (1, 128k), num_classes).
    """
    w1, b1, w2, b2 = params
    num_classes = w2.shape[-1]
    w1 = jnp.asarray(w1, jnp.float32)
    w2 = jnp.asarray(w2, jnp.float32)
    b1 = jnp.asarray(b1, jnp.float32).reshape(1, -1)
    b2 = jnp.asarray(b2, jnp.float32).reshape(1, -1)
    wc = jnp.dot(w1, w2, precision=lax.Precision.HIGHEST)        # (C, num_classes)
    bc = jnp.dot(b1, w2, precision=lax.Precision.HIGHEST) + b2   # (1, num_classes)
    ncp = _round_up(num_classes, _LANE)
    wc = jnp.pad(wc, ((0, 0), (0, ncp - num_classes)))                        # zero cols
    bc = jnp.pad(bc, ((0, 0), (0, ncp - num_classes)), constant_values=_NEG)  # -inf-ish
    return wc, bc, num_classes


def multihead_forward(x_nchw, wc, bc, *, num_classes, block_w=512,
                      compute_dtype=None, out_dtype=None, trim_classes=True):
    """MultiHead forward (CTC branch): Im2Seq -> fc neck -> CTC fc -> softmax.

    x_nchw: (B, C, 1, W) activations. wc/bc: outputs of fold_ctc_params.
    Returns (B, W, num_classes) probabilities, or the padded (B, W, 128) array
    when trim_classes=False (padded class probs are exactly 0; saves one HBM pass).
    """
    B, C, H, W = x_nchw.shape
    assert H == 1, "Im2Seq requires H == 1"
    ncp = wc.shape[-1]
    if out_dtype is None:
        out_dtype = x_nchw.dtype
    if compute_dtype is not None:
        wc = wc.astype(compute_dtype)          # tiny; activations are cast in-kernel
    bc = bc.astype(jnp.float32)

    # Im2Seq squeeze of H==1: metadata-only reshape, no HBM traffic.
    x3 = x_nchw.reshape(B, C, W)

    # W tiling: whole width per step when it fits (zero padding / zero waste);
    # otherwise lane-aligned tiles with a Pallas-masked ragged edge (no wrapper pad).
    if W <= block_w:
        wt = W
        if B == 1 and W >= 2 * _LANE:
            # keep >=2 grid steps so "parallel" can shard across v7x's two TCs
            wt = _round_up(pl.cdiv(W, 2), _LANE)
    else:
        wt = max(_LANE, (block_w // _LANE) * _LANE)
    n_wt = pl.cdiv(W, wt)

    kernel = functools.partial(_multihead_kernel, compute_dtype=compute_dtype)
    out_itemsize = jnp.dtype(out_dtype).itemsize
    cost = pl.CostEstimate(
        flops=2 * B * W * C * ncp,
        transcendentals=B * W * ncp,
        bytes_accessed=(x3.size * x3.dtype.itemsize
                        + B * W * ncp * out_itemsize
                        + wc.size * wc.dtype.itemsize
                        + bc.size * bc.dtype.itemsize))

    out = pl.pallas_call(
        kernel,
        out_shape=jax.ShapeDtypeStruct((B, W, ncp), out_dtype),
        grid=(B, n_wt),
        in_specs=[
            pl.BlockSpec((None, C, wt), lambda b, w: (b, 0, w)),   # (C, Wt) channel-major
            pl.BlockSpec((C, ncp), lambda b, w: (0, 0)),           # folded weight (resident)
            pl.BlockSpec((1, ncp), lambda b, w: (0, 0)),           # folded bias
        ],
        out_specs=pl.BlockSpec((None, wt, ncp), lambda b, w: (b, w, 0)),
        compiler_params=pltpu.CompilerParams(
            dimension_semantics=("parallel", "parallel")),
        cost_estimate=cost,
    )(x3, wc, bc)

    if trim_classes:
        out = out[..., :num_classes]
    return out


def init_params(key, in_channels, hidden_size, num_classes, dtype=jnp.float32):
    k1, k2, k3, k4 = jax.random.split(key, 4)
    w1 = jax.random.normal(k1, (in_channels, hidden_size), dtype) / jnp.sqrt(
        jnp.asarray(in_channels, dtype))
    b1 = 0.01 * jax.random.normal(k2, (1, hidden_size), dtype)
    w2 = jax.random.normal(k3, (hidden_size, num_classes), dtype) / jnp.sqrt(
        jnp.asarray(hidden_size, dtype))
    b2 = 0.01 * jax.random.normal(k4, (1, num_classes), dtype)
    return w1, b1, w2, b2


def reference_forward(x_nchw, params):
    """Pure-JAX reference with the *unfused* weights (original module math)."""
    w1, b1, w2, b2 = params
    seq = jnp.transpose(jnp.squeeze(x_nchw, axis=2), (0, 2, 1))   # Im2Seq -> (B, W, C)
    h = jnp.dot(seq, w1, precision=lax.Precision.HIGHEST) + b1.reshape(-1)
    logits = jnp.dot(h, w2, precision=lax.Precision.HIGHEST) + b2.reshape(-1)
    return jax.nn.softmax(logits, axis=-1)


if __name__ == "__main__":
    in_channels, hidden_size, num_classes = 64, 48, 37
    key = jax.random.PRNGKey(0)
    kx, kp = jax.random.split(key)
    params = init_params(kp, in_channels, hidden_size, num_classes)
    wc, bc, nc = fold_ctc_params(params)   # hoisted: fold + pad done once

    fwd = jax.jit(multihead_forward,
                  static_argnames=("num_classes", "block_w", "compute_dtype",
                                   "out_dtype", "trim_classes"))

    # --- test 1: small width, one W tile per batch image, f32 everywhere ----
    B, W = 3, 20
    x = jax.random.normal(kx, (B, in_channels, 1, W), jnp.float32)
    out = jax.block_until_ready(fwd(x, wc, bc, num_classes=nc))
    ref = reference_forward(x, params)
    assert out.shape == (B, W, nc)
    assert jnp.allclose(out, ref, atol=1e-3, rtol=1e-3), "f32 mismatch vs JAX reference"
    assert jnp.allclose(out.sum(-1), 1.0, atol=1e-3), "softmax rows must sum to 1"
    assert bool((out.argmax(-1) == ref.argmax(-1)).all()), "argmax mismatch"

    # --- test 2: wider input -> multi-step W grid (block_w=128, W=256) -------
    B2, W2 = 2, 256
    x2 = jax.random.normal(jax.random.fold_in(kx, 1),
                           (B2, in_channels, 1, W2), jnp.float32)
    out2 = jax.block_until_ready(fwd(x2, wc, bc, num_classes=nc, block_w=128))
    ref2 = reference_forward(x2, params)
    assert out2.shape == (B2, W2, nc)
    assert jnp.allclose(out2, ref2, atol=1e-3, rtol=1e-3), "tiled-W mismatch"

    # --- test 3: ragged W tile (W=200, wt=128 -> masked edge block) ----------
    B3, W3 = 2, 200
    x3 = jax.random.normal(jax.random.fold_in(kx, 2),
                           (B3, in_channels, 1, W3), jnp.float32)
    out3 = jax.block_until_ready(fwd(x3, wc, bc, num_classes=nc, block_w=128))
    ref3 = reference_forward(x3, params)
    assert out3.shape == (B3, W3, nc)
    assert jnp.allclose(out3, ref3, atol=1e-3, rtol=1e-3), "ragged-W mismatch"

    # --- test 4: bf16 MXU inputs + bf16 padded output (skips the trim pass) --
    out4 = jax.block_until_ready(
        fwd(x, wc, bc, num_classes=nc, compute_dtype=jnp.bfloat16,
            out_dtype=jnp.bfloat16, trim_classes=False))
    assert out4.shape == (B, W, 128) and out4.dtype == jnp.bfloat16
    assert jnp.allclose(out4[..., :nc].astype(jnp.float32), ref, atol=5e-2), "bf16 path"
    assert bool((out4[..., nc:] == 0).all()), "padded class probs must be exactly 0"

    print("KERNEL_OK")
</pallas_src>

<mosaic_0001>
module attributes {stable_mosaic.version = 11 : i64} {
  func.func @_multihead_kernel(%arg0: i32, %arg1: i32, %arg2: memref<1x64x20xf32, #tpu.memory_space<vmem>>, %arg3: memref<64x128xf32, #tpu.memory_space<vmem>>, %arg4: memref<1x128xf32, #tpu.memory_space<vmem>>, %arg5: memref<1x20x128xf32, #tpu.memory_space<vmem>>) attributes {dimension_semantics = [#tpu.dimension_semantics<parallel>, #tpu.dimension_semantics<parallel>], iteration_bounds = array<i64: 3, 1>, scalar_prefetch = 0 : i64, scratch_operands = 0 : i64, tpu.core_type = #tpu.core_type<tc>, window_params = [{transform_indices = @transform_0, window_bounds = array<i64: 1, 64, 20>}, {pipeline_mode = #tpu.pipeline_mode<synchronous>, transform_indices = @transform_1, window_bounds = array<i64: 64, 128>}, {pipeline_mode = #tpu.pipeline_mode<synchronous>, transform_indices = @transform_2, window_bounds = array<i64: 1, 128>}, {transform_indices = @transform_3, window_bounds = array<i64: 1, 20, 128>}]} {
    %c0 = arith.constant 0 : index
    %c0_0 = arith.constant 0 : index
    %c0_1 = arith.constant 0 : index
    %0 = vector.load %arg2[%c0, %c0_0, %c0_1] : memref<1x64x20xf32, #tpu.memory_space<vmem>>, vector<1x64x20xf32>
    %1 = vector.shape_cast %0 : vector<1x64x20xf32> to vector<64x20xf32>
    %c0_2 = arith.constant 0 : index
    %c0_3 = arith.constant 0 : index
    %2 = vector.load %arg3[%c0_2, %c0_3] : memref<64x128xf32, #tpu.memory_space<vmem>>, vector<64x128xf32>
    %cst = arith.constant dense<0.000000e+00> : vector<20x128xf32>
    %3 = tpu.matmul %1, %2, %cst {dimension_numbers = #tpu.dot_dimension_numbers<[0], [0], [1], [1], [0, 1, 1, 1], [], []>, precision = #tpu.contract_precision<fp32>} : vector<64x20xf32>, vector<64x128xf32>, vector<20x128xf32> -> vector<20x128xf32>
    %c0_4 = arith.constant 0 : index
    %c0_5 = arith.constant 0 : index
    %4 = vector.load %arg4[%c0_4, %c0_5] : memref<1x128xf32, #tpu.memory_space<vmem>>, vector<1x128xf32>
    %5 = vector.broadcast %4 : vector<1x128xf32> to vector<20x128xf32>
    %6 = arith.addf %3, %5 : vector<20x128xf32>
    %cst_6 = arith.constant dense<0xFF800000> : vector<20xf32>
    %7 = vector.multi_reduction <maximumf>, %6, %cst_6 [1] : vector<20x128xf32> to vector<20xf32>
    %8 = vector.shape_cast %7 : vector<20xf32> to vector<20x1xf32>
    %9 = vector.broadcast %8 : vector<20x1xf32> to vector<20x128xf32>
    %10 = arith.subf %6, %9 : vector<20x128xf32>
    %11 = math.exp %10 : vector<20x128xf32>
    %cst_7 = arith.constant dense<0.000000e+00> : vector<20xf32>
    %12 = vector.multi_reduction <add>, %11, %cst_7 [1] : vector<20x128xf32> to vector<20xf32>
    %13 = vector.shape_cast %12 : vector<20xf32> to vector<20x1xf32>
    %14 = vector.broadcast %13 : vector<20x1xf32> to vector<20x128xf32>
    %15 = arith.divf %11, %14 : vector<20x128xf32>
    %c0_8 = arith.constant 0 : index
    %c0_9 = arith.constant 0 : index
    %c0_10 = arith.constant 0 : index
    %16 = vector.load %arg5[%c0_8, %c0_9, %c0_10] : memref<1x20x128xf32, #tpu.memory_space<vmem>>, vector<1x20x128xf32>
    %17 = vector.shape_cast %16 : vector<1x20x128xf32> to vector<20x128xf32>
    %18 = vector.shape_cast %15 : vector<20x128xf32> to vector<1x20x128xf32>
    tpu.vector_store %arg5[%c0_8, %c0_9, %c0_10], %18 {strides = array<i32>} : memref<1x20x128xf32, #tpu.memory_space<vmem>>, vector<1x20x128xf32>,
    return
  }
  func.func @transform_0(%arg0: i32, %arg1: i32) -> (i32, i32, i32) {
    %c0_i32 = arith.constant 0 : i32
    %c0_i32_0 = arith.constant 0 : i32
    return %arg0, %c0_i32, %arg1 : i32, i32, i32
  }
  func.func @transform_1(%arg0: i32, %arg1: i32) -> (i32, i32) {
    %c0_i32 = arith.constant 0 : i32
    %c0_i32_0 = arith.constant 0 : i32
    %c0_i32_1 = arith.constant 0 : i32
    return %c0_i32, %c0_i32_0 : i32, i32
  }
  func.func @transform_2(%arg0: i32, %arg1: i32) -> (i32, i32) {
    %c0_i32 = arith.constant 0 : i32
    %c0_i32_0 = arith.constant 0 : i32
    %c0_i32_1 = arith.constant 0 : i32
    return %c0_i32, %c0_i32_0 : i32, i32
  }
  func.func @transform_3(%arg0: i32, %arg1: i32) -> (i32, i32, i32) {
    %c0_i32 = arith.constant 0 : i32
    %c0_i32_0 = arith.constant 0 : i32
    return %arg0, %arg1, %c0_i32 : i32, i32, i32
  }
}

</mosaic_0001>

<llo_original>
// kernel: multihead_forward.1
$region0: #{multihead_forward.1}
  #allocation0 [shape = 'u32[]', space=smem, size = 0x4, offset = 0x4, fixed_abs, tag = 'smem constant byte address 0x4 - core index']
  #allocation1 [shape = 'u32[144,128]{1,0:T(1,128)}', space=vmem, size = 0x12000, scoped, tag = 'internal scratch']
  %s0 = inlined_call_operand.vmem [shape: f32[3,64,20], index: 0, kind: input, shape index: {}]
  %s1 = inlined_call_operand.vmem [shape: f32[64,128], index: 1, kind: input, shape index: {}]
  %s2 = inlined_call_operand.vmem [shape: f32[1,128], index: 2, kind: input, shape index: {}]
  %s3 = inlined_call_operand.hbm [shape: f32[3,20,128], index: 3, kind: output, shape index: {}]
  %s4 = sld [smem:[#allocation0]]
  $region45: #{multihead_forward.1} parent=0
    _
  %s6 = ssub.s32 1, %s4
  %s7 = scalar_select 0, %s6, %s4
  $region1: #{multihead_forward.1} parent=0
    #allocation2 [shape = 'u8[24576]{0}', space=vmem, size = 0x6000, scoped, tag = 'output window, operand 0']
    #allocation3 [shape = 's32[2]{0}', space=sflag, size = 0x8, scoped, tag = 'scoped memory for multihead_forward.1']
    %8 = vsyncpa [#allocation3], 0
    %s9 = scalar_lea.sflag [#allocation3], 1
    %10 = vsyncpa %s9, 0
    loop: start=0, step=1, limit=5
    $region2: #{multihead_forward.1} parent=1 // loop_pre_header
      _
    $region3: #{multihead_forward.1} parent=1 // loop_header
      %s12 = sphi 0, %s16
      %p13 = scmp.ge.s32.totalorder %s12, 5
      %s19 = sphi 0, %s31
      %s20 = sphi 0, %s27
      %s21 = sphi 0, %s19
      %s22 = sphi 0, %s20
      %s23 = sphi 0, %s21
      %s24 = sphi 0, %s22
      %s36 = sphi 0, %s38
      %s39 = sphi 0, %s36
      %s40 = sphi 0, %s39
      %s56 = sphi 0, %s40
      %s60 = sphi 0, %s60
      %s62 = sphi 0, %s60
      %s63 = sphi 0, %s62
      %s77 = sphi 0, %s63
      %s81 = sphi 0, %s81
      %s83 = sphi 0, %s81
      %s84 = sphi 0, %s83
      %s98 = sphi 0, %s84
      %s106 = sphi 0, %s108
      %s109 = sphi 0, %s106
      %s110 = sphi 0, %s109
      %s126 = sphi 0, %s110
    $region4: #{multihead_forward.1} parent=1 // loop_header_branch
      %15 = sbr.rel (%p13) target = $region8
    $region5: #{multihead_forward.1} parent=1 // loop_body
      %s17 = ssub.s32 %s12, 1
      %s18 = ssub.s32 %s12, 2
      %s25 = sadd.s32 1, %s20
      %p26 = scmp.ge.s32.totalorder %s25, 1
      %s27 = scalar_select %p26, 0, %s25
      %s28 = sadd.s32 1, %s19
      %s29 = scalar_select %p26, %s28, %s19
      %p30 = scmp.ge.s32.totalorder %s29, 3
      %s31 = scalar_select %p30, 0, %s29
      %s32 = ssub.s32 %s19, %s31
      %s33 = ssub.s32 %s20, %s27
      %s34 = sor.u32 %s32, %s33
      %p35 = scmp.eq.s32.totalorder %s34, 0
      %s37 = sadd.s32 %s36, 1
      %s38 = scalar_select %p35, %s36, %s37
      %p41 = pneg %p35
      %p42 = scmp.eq.s32.totalorder %s12, 2
      %p43 = por %p41, %p42
      %p44 = scmp.ne.s32.totalorder %s36, %s39
      %p45 = scmp.eq.s32.totalorder %s12, 0
      %p46 = por %p44, %p45
      %p47 = scmp.ne.s32.totalorder %s36, %s39
      %p48 = scmp.eq.s32.totalorder %s17, 2
      %p49 = por %p47, %p48
      %p50 = scmp.ne.s32.totalorder %s39, %s40
      %p51 = scmp.eq.s32.totalorder %s17, 0
      %p52 = por %p50, %p51
      %p53 = scmp.ne.s32.totalorder %s39, %s40
      %p54 = scmp.eq.s32.totalorder %s18, 2
      %p55 = por %p53, %p54
      %p57 = scmp.ne.s32.totalorder %s40, %s56
      %p58 = scmp.eq.s32.totalorder %s18, 0
      %p59 = por %p57, %p58
      %s61 = sadd.s32 %s60, 1
      %p64 = scmp.eq.s32.totalorder %s12, 2
      %p65 = scmp.ne.s32.totalorder %s60, %s62
      %p66 = scmp.eq.s32.totalorder %s12, 0
      %p67 = por %p65, %p66
      %p68 = scmp.ne.s32.totalorder %s60, %s62
      %p69 = scmp.eq.s32.totalorder %s17, 2
      %p70 = por %p68, %p69
      %p71 = scmp.ne.s32.totalorder %s62, %s63
      %p72 = scmp.eq.s32.totalorder %s17, 0
      %p73 = por %p71, %p72
      %p74 = scmp.ne.s32.totalorder %s62, %s63
      %p75 = scmp.eq.s32.totalorder %s18, 2
      %p76 = por %p74, %p75
      %p78 = scmp.ne.s32.totalorder %s63, %s77
      %p79 = scmp.eq.s32.totalorder %s18, 0
      %p80 = por %p78, %p79
      %s82 = sadd.s32 %s81, 1
      %p85 = scmp.eq.s32.totalorder %s12, 2
      %p86 = scmp.ne.s32.totalorder %s81, %s83
      %p87 = scmp.eq.s32.totalorder %s12, 0
      %p88 = por %p86, %p87
      %p89 = scmp.ne.s32.totalorder %s81, %s83
      %p90 = scmp.eq.s32.totalorder %s17, 2
      %p91 = por %p89, %p90
      %p92 = scmp.ne.s32.totalorder %s83, %s84
      %p93 = scmp.eq.s32.totalorder %s17, 0
      %p94 = por %p92, %p93
      %p95 = scmp.ne.s32.totalorder %s83, %s84
      %p96 = scmp.eq.s32.totalorder %s18, 2
      %p97 = por %p95, %p96
      %p99 = scmp.ne.s32.totalorder %s84, %s98
      %p100 = scmp.eq.s32.totalorder %s18, 0
      %p101 = por %p99, %p100
      %s102 = ssub.s32 %s19, %s31
      %s103 = ssub.s32 %s20, %s27
      %s104 = sor.u32 %s102, %s103
      %p105 = scmp.eq.s32.totalorder %s104, 0
      %s107 = sadd.s32 %s106, 1
      %s108 = scalar_select %p105, %s106, %s107
      %p111 = pneg %p105
      %p112 = scmp.eq.s32.totalorder %s12, 2
      %p113 = por %p111, %p112
      %p114 = scmp.ne.s32.totalorder %s106, %s109
      %p115 = scmp.eq.s32.totalorder %s12, 0
      %p116 = por %p114, %p115
      %p117 = scmp.ne.s32.totalorder %s106, %s109
      %p118 = scmp.eq.s32.totalorder %s17, 2
      %p119 = por %p117, %p118
      %p120 = scmp.ne.s32.totalorder %s109, %s110
      %p121 = scmp.eq.s32.totalorder %s17, 0
      %p122 = por %p120, %p121
      %p123 = scmp.ne.s32.totalorder %s109, %s110
      %p124 = scmp.eq.s32.totalorder %s18, 2
      %p125 = por %p123, %p124
      %p127 = scmp.ne.s32.totalorder %s110, %s126
      %p128 = scmp.eq.s32.totalorder %s18, 0
      %p129 = por %p127, %p128
      %p130 = scmp.le.s32.totalorder 1, %s12
      %p131 = scmp.lt.s32.totalorder %s12, 4
      %p132 = pnand %p130, %p131
      %p133 = pneg %p132
      // Predicated region
      $region9: #{multihead_forward.1} parent=5 // pred_check
        _
      $region10: #{multihead_forward.1} parent=5 // pred_check_branch
        %135 = sbr.rel (%p132) target = $region12
      $region11: #{multihead_forward.1} parent=5 // pred_region
        %s136 = ssub.s32 %s12, 1
        // Predicated region
        $region13: #{multihead_forward.1} parent=11 // pred_check
          %p137 = pneg %p73
        $region14: #{multihead_forward.1} parent=11 // pred_check_branch
          %139 = sbr.rel (%p137) target = $region16
        $region15: #{multihead_forward.1} parent=11 // pred_region
          _
        $region16: #{multihead_forward.1} parent=11 // pred_fallthru
          _
        // Predicated region
        $region17: #{multihead_forward.1} parent=11 // pred_check
          %p140 = pneg %p94
        $region18: #{multihead_forward.1} parent=11 // pred_check_branch
          %142 = sbr.rel (%p140) target = $region20
        $region19: #{multihead_forward.1} parent=11 // pred_region
          _
        $region20: #{multihead_forward.1} parent=11 // pred_fallthru
          _
      $region12: #{multihead_forward.1} parent=5 // pred_fallthru
        _
      %p143 = scmp.lt.s32.totalorder %s12, 3
      // Predicated region
      $region21: #{multihead_forward.1} parent=5 // pred_check
        %p144 = pneg %p143
      $region22: #{multihead_forward.1} parent=5 // pred_check_branch
        %146 = sbr.rel (%p144) target = $region24
      $region23: #{multihead_forward.1} parent=5 // pred_region
        // Predicated region
        $region25: #{multihead_forward.1} parent=23 // pred_check
          %p147 = pneg %p46
        $region26: #{multihead_forward.1} parent=23 // pred_check_branch
          %149 = sbr.rel (%p147) target = $region28
        $region27: #{multihead_forward.1} parent=23 // pred_region
          %p150 = scmp.lt.s32.totalorder %s19, 2
          %s151 = scalar_select %p150, %s19, 2
          %p152 = scmp.lt.s32.totalorder %s20, 0
          %s153 = scalar_select %p152, %s20, 0
          %s154 = smul.addr %s151, 8
          %s155 = sadd.s32 %s153, %s154
          %s156 = smul.addr %s155, 8
          %s157 = scalar_lea.vmem %s0, %s156
        $region28: #{multihead_forward.1} parent=23 // pred_fallthru
          _
      $region24: #{multihead_forward.1} parent=5 // pred_fallthru
        _
      %p158 = scmp.le.s32.totalorder 1, %s12
      %p159 = scmp.lt.s32.totalorder %s12, 4
      %p160 = pnand %p158, %p159
      %p161 = pneg %p160
      // Predicated region
      $region29: #{multihead_forward.1} parent=5 // pred_check
        _
      $region30: #{multihead_forward.1} parent=5 // pred_check_branch
        %163 = sbr.rel (%p160) target = $region32
      $region31: #{multihead_forward.1} parent=5 // pred_region
        %s164 = ssub.s32 %s12, 1
        %p165 = scmp.lt.s32.totalorder %s21, 2
        %s166 = scalar_select %p165, %s21, 2
        %p167 = scmp.lt.s32.totalorder %s22, 0
        %s168 = scalar_select %p167, %s22, 0
        %s169 = smul.addr %s166, 8
        %s170 = sadd.s32 %s168, %s169
        %s171 = smul.addr %s170, 8
        %s172 = scalar_lea.vmem %s0, %s171
        %p173 = pneg %p52
        %p174 = pneg %p49
        %p175 = pneg %p73
        %p176 = pneg %p70
        %p177 = pneg %p94
        %p178 = pneg %p91
        %p179 = pneg %p122
        %p180 = pneg %p119
        %s181 = sand.u32 %s109, 1
        %s182 = scalar_lea.sflag [#allocation3], %s181
        %s183 = sand.u32 %s109, 1
        %s184 = smul.addr %s183, 24
        %s185 = scalar_lea.vmem [#allocation2], %s184
        %p186 = scmp.lt.s32.totalorder %s21, 2
        %s187 = scalar_select %p186, %s21, 2
        %p188 = scmp.lt.s32.totalorder %s22, 0
        %s189 = scalar_select %p188, %s22, 0
        %s190 = smul.addr %s187, 8
        %s191 = sadd.s32 %s189, %s190
        %s192 = smul.addr %s191, 8
        %s193 = scalar_lea.vmem %s0, %s192
        %s194 = smul.u32 3, %s22
        %v195 = vld [vmem:[%s193] sm:$0xff]
        %v196 = vld [vmem:[%s193 + $0x8] sm:$0xff]
        %v197 = vld [vmem:[%s193 + $0x10] sm:$0xff]
        %v198 = vld [vmem:[%s193 + $0x18] sm:$0xff]
        %v199 = vld [vmem:[%s193 + $0x20] sm:$0xff]
        %v200 = vld [vmem:[%s193 + $0x28] sm:$0xff]
        %v201 = vld [vmem:[%s193 + $0x30] sm:$0xff]
        %v202 = vld [vmem:[%s193 + $0x38] sm:$0xff]
        %v203 = vld [vmem:[%s1] sm:$0xff]
        %v204 = vld [vmem:[%s1 + $0x8] sm:$0xff]
        %v205 = vld [vmem:[%s1 + $0x10] sm:$0xff]
        %v206 = vld [vmem:[%s1 + $0x18] sm:$0xff]
        %v207 = vld [vmem:[%s1 + $0x20] sm:$0xff]
        %v208 = vld [vmem:[%s1 + $0x28] sm:$0xff]
        %v209 = vld [vmem:[%s1 + $0x30] sm:$0xff]
        %v210 = vld [vmem:[%s1 + $0x38] sm:$0xff]
        %v211 = vld [vmem:[%s2] sm:$0x1]
        %v213 = vlaneseq
        %v214 = vshrl.u32 %v213, 7
        %v215 = vsub.s32 0, %v214
        %v216 = vrot.slane %v211, %v215
        %218 = vxpose.xlu0.b32.start [1/16] %v195, 128
        %219 = vxpose.xlu0.b32.cont [2/16] %v196, 128
        %220 = vxpose.xlu0.b32.cont [3/16] %v197, 128
        %221 = vxpose.xlu0.b32.cont [4/16] %v198, 128
        %222 = vxpose.xlu0.b32.cont [5/16] %v199, 128
        %223 = vxpose.xlu0.b32.cont [6/16] %v200, 128
        %224 = vxpose.xlu0.b32.cont [7/16] %v201, 128
        %225 = vxpose.xlu0.b32.cont [8/16] %v202, 128
        %226 = vxpose.xlu0.b32.cont [9/16] 0.0, 128
        %227 = vxpose.xlu0.b32.cont [10/16] 0.0, 128
        %228 = vxpose.xlu0.b32.cont [11/16] 0.0, 128
        %229 = vxpose.xlu0.b32.cont [12/16] 0.0, 128
        %230 = vxpose.xlu0.b32.cont [13/16] 0.0, 128
        %231 = vxpose.xlu0.b32.cont [14/16] 0.0, 128
        %232 = vxpose.xlu0.b32.cont [15/16] 0.0, 128
        %233 = vxpose.xlu0.b32.end [16/16] 0.0, 128
        %v234 = vpop.trf.xlu0
        %v235 = vpop.trf.xlu0
        %v236 = vpop.trf.xlu0
        %v237 = vpop.trf.xlu0
        %v238 = vpop.trf.xlu0
        %v239 = vpop.trf.xlu0
        %v240 = vpop.trf.xlu0
        %v241 = vpop.trf.xlu0
        %v242 = vpop.trf.xlu0
        %v243 = vpop.trf.xlu0
        %v244 = vpop.trf.xlu0
        %v245 = vpop.trf.xlu0
        %v246 = vpop.trf.xlu0
        %v247 = vpop.trf.xlu0
        %v248 = vpop.trf.xlu0
        %v249 = vpop.trf.xlu0
        %vm250 = vcmask 523264
        %v252 = vsel %vm250, %v234, 0
        %v255 = vsel %vm250, %v235, 0
        %v258 = vsel %vm250, %v236, 0
        %260 = vmatprep.subr.mxu0 0.0
        %261 = vmatpush1.msra.mxu0 0.0
        %262 = vmatprep.subr.mxu0 0.0
        %263 = vmatpush1.msra.mxu0 0.0
        %264 = vmatprep.subr.mxu0 0.0
        %265 = vmatpush1.msra.mxu0 0.0
        %266 = vmatprep.subr.mxu0 0.0
        %267 = vmatpush1.msra.mxu0 0.0
        %268 = vmatprep.subr.mxu0 0.0
        %269 = vmatpush1.msra.mxu0 0.0
        %270 = vmatprep.subr.mxu0 0.0
        %271 = vmatpush1.msra.mxu0 0.0
        %272 = vmatprep.subr.mxu0 0.0
        %273 = vmatpush1.msra.mxu0 0.0
        %274 = vmatprep.subr.mxu0 0.0
        %275 = vmatpush1.msra.mxu0 0.0
        %276 = vmatprep.subr.mxu0 0.0
        %v277 = vand.u32 %v210, 4294901760
        %278 = vmatpush1.msra.mxu0 %v277
        %279 = vmatprep.subr.mxu0 0.0
        %v280 = vand.u32 %v209, 4294901760
        %281 = vmatpush1.msra.mxu0 %v280
        %282 = vmatprep.subr.mxu0 0.0
        %v283 = vand.u32 %v208, 4294901760
        %284 = vmatpush1.msra.mxu0 %v283
        %285 = vmatprep.subr.mxu0 0.0
        %v286 = vand.u32 %v207, 4294901760
        %287 = vmatpush1.msra.mxu0 %v286
        %288 = vmatprep.subr.mxu0 0.0
        %v289 = vand.u32 %v206, 4294901760
        %290 = vmatpush1.msra.mxu0 %v289
        %291 = vmatprep.subr.mxu0 0.0
        %v292 = vand.u32 %v205, 4294901760
        %293 = vmatpush1.msra.mxu0 %v292
        %294 = vmatprep.subr.mxu0 0.0
        %v295 = vand.u32 %v204, 4294901760
        %296 = vmatpush1.msra.mxu0 %v295
        %297 = vmatprep.subr.mxu0 0.0
        %v298 = vand.u32 %v203, 4294901760
        %299 = vmatpush1.msra.mxu0 %v298
        %300 = vmatprep.subr.mxu0 0.0
        %301 = vmatpush2.msra.mxu0 0.0
        %302 = vmatprep.subr.mxu0 0.0
        %303 = vmatpush2.msra.mxu0 0.0
        %304 = vmatprep.subr.mxu0 0.0
        %305 = vmatpush2.msra.mxu0 0.0
        %306 = vmatprep.subr.mxu0 0.0
        %307 = vmatpush2.msra.mxu0 0.0
        %308 = vmatprep.subr.mxu0 0.0
        %309 = vmatpush2.msra.mxu0 0.0
        %310 = vmatprep.subr.mxu0 0.0
        %311 = vmatpush2.msra.mxu0 0.0
        %312 = vmatprep.subr.mxu0 0.0
        %313 = vmatpush2.msra.mxu0 0.0
        %314 = vmatprep.subr.mxu0 0.0
        %315 = vmatpush2.msra.mxu0 0.0
        %316 = vmatprep.subr.mxu0 0.0
        %317 = vmatpush2.msra.mxu0 0.0
        %318 = vmatprep.subr.mxu0 0.0
        %319 = vmatpush2.msra.mxu0 0.0
        %320 = vmatprep.subr.mxu0 0.0
        %321 = vmatpush2.msra.mxu0 0.0
        %322 = vmatprep.subr.mxu0 0.0
        %323 = vmatpush2.msra.mxu0 0.0
        %324 = vmatprep.subr.mxu0 0.0
        %325 = vmatpush2.msra.mxu0 0.0
        %326 = vmatprep.subr.mxu0 0.0
        %327 = vmatpush2.msra.mxu0 0.0
        %328 = vmatprep.subr.mxu0 0.0
        %329 = vmatpush2.msra.mxu0 0.0
        %330 = vmatprep.subr.mxu0 0.0
        %331 = vmatpush2.msra.mxu0 0.0
        %332 = vmatprep.mubr.f32.mxu0 0.0
        %v333 = vand.u32 %v252, 4294901760
        %v334 = vsub.f32 %v252, %v333
        %v335 = vand.u32 %v334, 4294901760
        %v336 = vsub.f32 %v334, %v335
        %v337 = vand.u32 %v336, 4294901760
        %338 = vmatmul.mubr.f32.gmra.mxu0 %v337
        %v339 = vpop.f32.mrf.mxu0
        %v340 = vadd.f32 %v216, %v339
        %v341 = vpop.f32.mrf.mxu0
        %342 = vmatprep.mubr.f32.mxu0 0.0
        %v343 = vand.u32 %v255, 4294901760
        %v344 = vsub.f32 %v255, %v343
        %v345 = vand.u32 %v344, 4294901760
        %v346 = vsub.f32 %v344, %v345
        %v347 = vand.u32 %v346, 4294901760
        %348 = vmatmul.mubr.f32.gmra.mxu0 %v347
        %v349 = vpop.f32.mrf.mxu0
        %v350 = vadd.f32 %v216, %v349
        %v351 = vpop.f32.mrf.mxu0
        %352 = vmatprep.mubr.f32.mxu0 0.0
        %v353 = vand.u32 %v258, 4294901760
        %v354 = vsub.f32 %v258, %v353
        %v355 = vand.u32 %v354, 4294901760
        %v356 = vsub.f32 %v354, %v355
        %v357 = vand.u32 %v356, 4294901760
        %358 = vmatmul.mubr.f32.gmra.mxu0 %v357
        %v359 = vpop.f32.mrf.mxu0
        %v360 = vadd.f32 %v216, %v359
        %v361 = vpop.f32.mrf.mxu0
        %362 = vdwg.mxu0
        %363 = vmatprep.subr.mxu0 0.0
        %364 = vmatpush1.msra.mxu0 0.0
        %365 = vmatprep.subr.mxu0 0.0
        %366 = vmatpush1.msra.mxu0 0.0
        %367 = vmatprep.subr.mxu0 0.0
        %368 = vmatpush1.msra.mxu0 0.0
        %369 = vmatprep.subr.mxu0 0.0
        %370 = vmatpush1.msra.mxu0 0.0
        %371 = vmatprep.subr.mxu0 0.0
        %372 = vmatpush1.msra.mxu0 0.0
        %373 = vmatprep.subr.mxu0 0.0
        %374 = vmatpush1.msra.mxu0 0.0
        %375 = vmatprep.subr.mxu0 0.0
        %376 = vmatpush1.msra.mxu0 0.0
        %377 = vmatprep.subr.mxu0 0.0
        %378 = vmatpush1.msra.mxu0 0.0
        %379 = vmatprep.subr.mxu0 0.0
        %v380 = vand.u32 %v210, 4294901760
        %v381 = vsub.f32 %v210, %v380
        %v382 = vand.u32 %v381, 4294901760
        %v383 = vsub.f32 %v381, %v382
        %v384 = vand.u32 %v383, 4294901760
        %385 = vmatpush1.msra.mxu0 %v384
        %386 = vmatprep.subr.mxu0 0.0
        %v387 = vand.u32 %v209, 4294901760
        %v388 = vsub.f32 %v209, %v387
        %v389 = vand.u32 %v388, 4294901760
        %v390 = vsub.f32 %v388, %v389
        %v391 = vand.u32 %v390, 4294901760
        %392 = vmatpush1.msra.mxu0 %v391
        %393 = vmatprep.subr.mxu0 0.0
        %v394 = vand.u32 %v208, 4294901760
        %v395 = vsub.f32 %v208, %v394
        %v396 = vand.u32 %v395, 4294901760
        %v397 = vsub.f32 %v395, %v396
        %v398 = vand.u32 %v397, 4294901760
        %399 = vmatpush1.msra.mxu0 %v398
        %400 = vmatprep.subr.mxu0 0.0
        %v401 = vand.u32 %v207, 4294901760
        %v402 = vsub.f32 %v207, %v401
        %v403 = vand.u32 %v402, 4294901760
        %v404 = vsub.f32 %v402, %v403
        %v405 = vand.u32 %v404, 4294901760
        %406 = vmatpush1.msra.mxu0 %v405
        %407 = vmatprep.subr.mxu0 0.0
        %v408 = vand.u32 %v206, 4294901760
        %v409 = vsub.f32 %v206, %v408
        %v410 = vand.u32 %v409, 4294901760
        %v411 = vsub.f32 %v409, %v410
        %v412 = vand.u32 %v411, 4294901760
        %413 = vmatpush1.msra.mxu0 %v412
        %414 = vmatprep.subr.mxu0 0.0
        %v415 = vand.u32 %v205, 4294901760
        %v416 = vsub.f32 %v205, %v415
        %v417 = vand.u32 %v416, 4294901760
        %v418 = vsub.f32 %v416, %v417
        %v419 = vand.u32 %v418, 4294901760
        %420 = vmatpush1.msra.mxu0 %v419
        %421 = vmatprep.subr.mxu0 0.0
        %v422 = vand.u32 %v204, 4294901760
        %v423 = vsub.f32 %v204, %v422
        %v424 = vand.u32 %v423, 4294901760
        %v425 = vsub.f32 %v423, %v424
        %v426 = vand.u32 %v425, 4294901760
        %427 = vmatpush1.msra.mxu0 %v426
        %428 = vmatprep.subr.mxu0 0.0
        %v429 = vand.u32 %v203, 4294901760
        %v430 = vsub.f32 %v203, %v429
        %v431 = vand.u32 %v430, 4294901760
        %v432 = vsub.f32 %v430, %v431
        %v433 = vand.u32 %v432, 4294901760
        %434 = vmatpush1.msra.mxu0 %v433
        %435 = vmatprep.subr.mxu0 0.0
        %436 = vmatpush2.msra.mxu0 0.0
        %437 = vmatprep.subr.mxu0 0.0
        %438 = vmatpush2.msra.mxu0 0.0
        %439 = vmatprep.subr.mxu0 0.0
        %440 = vmatpush2.msra.mxu0 0.0
        %441 = vmatprep.subr.mxu0 0.0
        %442 = vmatpush2.msra.mxu0 0.0
        %443 = vmatprep.subr.mxu0 0.0
        %444 = vmatpush2.msra.mxu0 0.0
        %445 = vmatprep.subr.mxu0 0.0
        %446 = vmatpush2.msra.mxu0 0.0
        %447 = vmatprep.subr.mxu0 0.0
        %448 = vmatpush2.msra.mxu0 0.0
        %449 = vmatprep.subr.mxu0 0.0
        %450 = vmatpush2.msra.mxu0 0.0
        %451 = vmatprep.subr.mxu0 0.0
        %452 = vmatpush2.msra.mxu0 0.0
        %453 = vmatprep.subr.mxu0 0.0
        %454 = vmatpush2.msra.mxu0 0.0
        %455 = vmatprep.subr.mxu0 0.0
        %456 = vmatpush2.msra.mxu0 0.0
        %457 = vmatprep.subr.mxu0 0.0
        %458 = vmatpush2.msra.mxu0 0.0
        %459 = vmatprep.subr.mxu0 0.0
        %460 = vmatpush2.msra.mxu0 0.0
        %461 = vmatprep.subr.mxu0 0.0
        %462 = vmatpush2.msra.mxu0 0.0
        %463 = vmatprep.subr.mxu0 0.0
        %464 = vmatpush2.msra.mxu0 0.0
        %465 = vmatprep.subr.mxu0 0.0
        %466 = vmatpush2.msra.mxu0 0.0
        %467 = vmatprep.mubr.f32.mxu0 0.0
        %v468 = vand.u32 %v252, 4294901760
        %469 = vmatmul.mubr.f32.gmra.mxu0 %v468
        %v470 = vpop.f32.mrf.mxu0
        %v471 = vadd.f32 %v340, %v470
        %v472 = vpop.f32.mrf.mxu0
        %473 = vmatprep.mubr.f32.mxu0 0.0
        %v474 = vand.u32 %v255, 4294901760
        %475 = vmatmul.mubr.f32.gmra.mxu0 %v474
        %v476 = vpop.f32.mrf.mxu0
        %v477 = vadd.f32 %v350, %v476
        %v478 = vpop.f32.mrf.mxu0
        %479 = vmatprep.mubr.f32.mxu0 0.0
        %v480 = vand.u32 %v258, 4294901760
        %481 = vmatmul.mubr.f32.gmra.mxu0 %v480
        %v482 = vpop.f32.mrf.mxu0
        %v483 = vadd.f32 %v360, %v482
        %v484 = vpop.f32.mrf.mxu0
        %485 = vdwg.mxu0
        %486 = vmatprep.subr.mxu0 0.0
        %487 = vmatpush1.msra.mxu0 0.0
        %488 = vmatprep.subr.mxu0 0.0
        %489 = vmatpush1.msra.mxu0 0.0
        %490 = vmatprep.subr.mxu0 0.0
        %491 = vmatpush1.msra.mxu0 0.0
        %492 = vmatprep.subr.mxu0 0.0
        %493 = vmatpush1.msra.mxu0 0.0
        %494 = vmatprep.subr.mxu0 0.0
        %495 = vmatpush1.msra.mxu0 0.0
        %496 = vmatprep.subr.mxu0 0.0
        %497 = vmatpush1.msra.mxu0 0.0
        %498 = vmatprep.subr.mxu0 0.0
        %499 = vmatpush1.msra.mxu0 0.0
        %500 = vmatprep.subr.mxu0 0.0
        %501 = vmatpush1.msra.mxu0 0.0
        %502 = vmatprep.subr.mxu0 0.0
        %v503 = vand.u32 %v210, 4294901760
        %v504 = vsub.f32 %v210, %v503
        %505 = vmatpush1.msra.mxu0 %v504
        %506 = vmatprep.subr.mxu0 0.0
        %v507 = vand.u32 %v209, 4294901760
        %v508 = vsub.f32 %v209, %v507
        %509 = vmatpush1.msra.mxu0 %v508
        %510 = vmatprep.subr.mxu0 0.0
        %v511 = vand.u32 %v208, 4294901760
        %v512 = vsub.f32 %v208, %v511
        %513 = vmatpush1.msra.mxu0 %v512
        %514 = vmatprep.subr.mxu0 0.0
        %v515 = vand.u32 %v207, 4294901760
        %v516 = vsub.f32 %v207, %v515
        %517 = vmatpush1.msra.mxu0 %v516
        %518 = vmatprep.subr.mxu0 0.0
        %v519 = vand.u32 %v206, 4294901760
        %v520 = vsub.f32 %v206, %v519
        %521 = vmatpush1.msra.mxu0 %v520
        %522 = vmatprep.subr.mxu0 0.0
        %v523 = vand.u32 %v205, 4294901760
        %v524 = vsub.f32 %v205, %v523
        %525 = vmatpush1.msra.mxu0 %v524
        %526 = vmatprep.subr.mxu0 0.0
        %v527 = vand.u32 %v204, 4294901760
        %v528 = vsub.f32 %v204, %v527
        %529 = vmatpush1.msra.mxu0 %v528
        %530 = vmatprep.subr.mxu0 0.0
        %v531 = vand.u32 %v203, 4294901760
        %v532 = vsub.f32 %v203, %v531
        %533 = vmatpush1.msra.mxu0 %v532
        %534 = vmatprep.subr.mxu0 0.0
        %535 = vmatpush2.msra.mxu0 0.0
        %536 = vmatprep.subr.mxu0 0.0
        %537 = vmatpush2.msra.mxu0 0.0
        %538 = vmatprep.subr.mxu0 0.0
        %539 = vmatpush2.msra.mxu0 0.0
        %540 = vmatprep.subr.mxu0 0.0
        %541 = vmatpush2.msra.mxu0 0.0
        %542 = vmatprep.subr.mxu0 0.0
        %543 = vmatpush2.msra.mxu0 0.0
        %544 = vmatprep.subr.mxu0 0.0
        %545 = vmatpush2.msra.mxu0 0.0
        %546 = vmatprep.subr.mxu0 0.0
        %547 = vmatpush2.msra.mxu0 0.0
        %548 = vmatprep.subr.mxu0 0.0
        %549 = vmatpush2.msra.mxu0 0.0
        %550 = vmatprep.subr.mxu0 0.0
        %551 = vmatpush2.msra.mxu0 0.0
        %552 = vmatprep.subr.mxu0 0.0
        %553 = vmatpush2.msra.mxu0 0.0
        %554 = vmatprep.subr.mxu0 0.0
        %555 = vmatpush2.msra.mxu0 0.0
        %556 = vmatprep.subr.mxu0 0.0
        %557 = vmatpush2.msra.mxu0 0.0
        %558 = vmatprep.subr.mxu0 0.0
        %559 = vmatpush2.msra.mxu0 0.0
        %560 = vmatprep.subr.mxu0 0.0
        %561 = vmatpush2.msra.mxu0 0.0
        %562 = vmatprep.subr.mxu0 0.0
        %563 = vmatpush2.msra.mxu0 0.0
        %564 = vmatprep.subr.mxu0 0.0
        %565 = vmatpush2.msra.mxu0 0.0
        %566 = vmatprep.mubr.f32.mxu0 0.0
        %v567 = vand.u32 %v252, 4294901760
        %v568 = vsub.f32 %v252, %v567
        %569 = vmatmul.mubr.f32.gmra.mxu0 %v568
        %v570 = vpop.f32.mrf.mxu0
        %v571 = vadd.f32 %v471, %v570
        %v572 = vpop.f32.mrf.mxu0
        %573 = vmatprep.mubr.f32.mxu0 0.0
        %v574 = vand.u32 %v255, 4294901760
        %v575 = vsub.f32 %v255, %v574
        %576 = vmatmul.mubr.f32.gmra.mxu0 %v575
        %v577 = vpop.f32.mrf.mxu0
        %v578 = vadd.f32 %v477, %v577
        %v579 = vpop.f32.mrf.mxu0
        %580 = vmatprep.mubr.f32.mxu0 0.0
        %v581 = vand.u32 %v258, 4294901760
        %v582 = vsub.f32 %v258, %v581
        %583 = vmatmul.mubr.f32.gmra.mxu0 %v582
        %v584 = vpop.f32.mrf.mxu0
        %v585 = vadd.f32 %v483, %v584
        %v586 = vpop.f32.mrf.mxu0
        %587 = vdwg.mxu0
        %588 = vmatprep.subr.mxu0 0.0
        %589 = vmatpush1.msra.mxu0 0.0
        %590 = vmatprep.subr.mxu0 0.0
        %591 = vmatpush1.msra.mxu0 0.0
        %592 = vmatprep.subr.mxu0 0.0
        %593 = vmatpush1.msra.mxu0 0.0
        %594 = vmatprep.subr.mxu0 0.0
        %595 = vmatpush1.msra.mxu0 0.0
        %596 = vmatprep.subr.mxu0 0.0
        %597 = vmatpush1.msra.mxu0 0.0
        %598 = vmatprep.subr.mxu0 0.0
        %599 = vmatpush1.msra.mxu0 0.0
        %600 = vmatprep.subr.mxu0 0.0
        %601 = vmatpush1.msra.mxu0 0.0
        %602 = vmatprep.subr.mxu0 0.0
        %603 = vmatpush1.msra.mxu0 0.0
        %604 = vmatprep.subr.mxu0 0.0
        %v605 = vand.u32 %v210, 4294901760
        %606 = vmatpush1.msra.mxu0 %v605
        %607 = vmatprep.subr.mxu0 0.0
        %v608 = vand.u32 %v209, 4294901760
        %609 = vmatpush1.msra.mxu0 %v608
        %610 = vmatprep.subr.mxu0 0.0
        %v611 = vand.u32 %v208, 4294901760
        %612 = vmatpush1.msra.mxu0 %v611
        %613 = vmatprep.subr.mxu0 0.0
        %v614 = vand.u32 %v207, 4294901760
        %615 = vmatpush1.msra.mxu0 %v614
        %616 = vmatprep.subr.mxu0 0.0
        %v617 = vand.u32 %v206, 4294901760
        %618 = vmatpush1.msra.mxu0 %v617
        %619 = vmatprep.subr.mxu0 0.0
        %v620 = vand.u32 %v205, 4294901760
        %621 = vmatpush1.msra.mxu0 %v620
        %622 = vmatprep.subr.mxu0 0.0
        %v623 = vand.u32 %v204, 4294901760
        %624 = vmatpush1.msra.mxu0 %v623
        %625 = vmatprep.subr.mxu0 0.0
        %v626 = vand.u32 %v203, 4294901760
        %627 = vmatpush1.msra.mxu0 %v626
        %628 = vmatprep.subr.mxu0 0.0
        %629 = vmatpush2.msra.mxu0 0.0
        %630 = vmatprep.subr.mxu0 0.0
        %631 = vmatpush2.msra.mxu0 0.0
        %632 = vmatprep.subr.mxu0 0.0
        %633 = vmatpush2.msra.mxu0 0.0
        %634 = vmatprep.subr.mxu0 0.0
        %635 = vmatpush2.msra.mxu0 0.0
        %636 = vmatprep.subr.mxu0 0.0
        %637 = vmatpush2.msra.mxu0 0.0
        %638 = vmatprep.subr.mxu0 0.0
        %639 = vmatpush2.msra.mxu0 0.0
        %640 = vmatprep.subr.mxu0 0.0
        %641 = vmatpush2.msra.mxu0 0.0
        %642 = vmatprep.subr.mxu0 0.0
        %643 = vmatpush2.msra.mxu0 0.0
        %644 = vmatprep.subr.mxu0 0.0
        %645 = vmatpush2.msra.mxu0 0.0
        %646 = vmatprep.subr.mxu0 0.0
        %647 = vmatpush2.msra.mxu0 0.0
        %648 = vmatprep.subr.mxu0 0.0
        %649 = vmatpush2.msra.mxu0 0.0
        %650 = vmatprep.subr.mxu0 0.0
        %651 = vmatpush2.msra.mxu0 0.0
        %652 = vmatprep.subr.mxu0 0.0
        %653 = vmatpush2.msra.mxu0 0.0
        %654 = vmatprep.subr.mxu0 0.0
        %655 = vmatpush2.msra.mxu0 0.0
        %656 = vmatprep.subr.mxu0 0.0
        %657 = vmatpush2.msra.mxu0 0.0
        %658 = vmatprep.subr.mxu0 0.0
        %659 = vmatpush2.msra.mxu0 0.0
        %660 = vmatprep.mubr.f32.mxu0 0.0
        %v661 = vand.u32 %v252, 4294901760
        %v662 = vsub.f32 %v252, %v661
        %v663 = vand.u32 %v662, 4294901760
        %664 = vmatmul.mubr.f32.gmra.mxu0 %v663
        %v665 = vpop.f32.mrf.mxu0
        %v666 = vadd.f32 %v571, %v665
        %v667 = vpop.f32.mrf.mxu0
        %668 = vmatprep.mubr.f32.mxu0 0.0
        %v669 = vand.u32 %v255, 4294901760
        %v670 = vsub.f32 %v255, %v669
        %v671 = vand.u32 %v670, 4294901760
        %672 = vmatmul.mubr.f32.gmra.mxu0 %v671
        %v673 = vpop.f32.mrf.mxu0
        %v674 = vadd.f32 %v578, %v673
        %v675 = vpop.f32.mrf.mxu0
        %676 = vmatprep.mubr.f32.mxu0 0.0
        %v677 = vand.u32 %v258, 4294901760
        %v678 = vsub.f32 %v258, %v677
        %v679 = vand.u32 %v678, 4294901760
        %680 = vmatmul.mubr.f32.gmra.mxu0 %v679
        %v681 = vpop.f32.mrf.mxu0
        %v682 = vadd.f32 %v585, %v681
        %v683 = vpop.f32.mrf.mxu0
        %684 = vdwg.mxu0
        %685 = vmatprep.subr.mxu0 0.0
        %686 = vmatpush1.msra.mxu0 0.0
        %687 = vmatprep.subr.mxu0 0.0
        %688 = vmatpush1.msra.mxu0 0.0
        %689 = vmatprep.subr.mxu0 0.0
        %690 = vmatpush1.msra.mxu0 0.0
        %691 = vmatprep.subr.mxu0 0.0
        %692 = vmatpush1.msra.mxu0 0.0
        %693 = vmatprep.subr.mxu0 0.0
        %694 = vmatpush1.msra.mxu0 0.0
        %695 = vmatprep.subr.mxu0 0.0
        %696 = vmatpush1.msra.mxu0 0.0
        %697 = vmatprep.subr.mxu0 0.0
        %698 = vmatpush1.msra.mxu0 0.0
        %699 = vmatprep.subr.mxu0 0.0
        %700 = vmatpush1.msra.mxu0 0.0
        %701 = vmatprep.subr.mxu0 0.0
        %v702 = vand.u32 %v210, 4294901760
        %v703 = vsub.f32 %v210, %v702
        %v704 = vand.u32 %v703, 4294901760
        %705 = vmatpush1.msra.mxu0 %v704
        %706 = vmatprep.subr.mxu0 0.0
        %v707 = vand.u32 %v209, 4294901760
        %v708 = vsub.f32 %v209, %v707
        %v709 = vand.u32 %v708, 4294901760
        %710 = vmatpush1.msra.mxu0 %v709
        %711 = vmatprep.subr.mxu0 0.0
        %v712 = vand.u32 %v208, 4294901760
        %v713 = vsub.f32 %v208, %v712
        %v714 = vand.u32 %v713, 4294901760
        %715 = vmatpush1.msra.mxu0 %v714
        %716 = vmatprep.subr.mxu0 0.0
        %v717 = vand.u32 %v207, 4294901760
        %v718 = vsub.f32 %v207, %v717
        %v719 = vand.u32 %v718, 4294901760
        %720 = vmatpush1.msra.mxu0 %v719
        %721 = vmatprep.subr.mxu0 0.0
        %v722 = vand.u32 %v206, 4294901760
        %v723 = vsub.f32 %v206, %v722
        %v724 = vand.u32 %v723, 4294901760
        %725 = vmatpush1.msra.mxu0 %v724
        %726 = vmatprep.subr.mxu0 0.0
        %v727 = vand.u32 %v205, 4294901760
        %v728 = vsub.f32 %v205, %v727
        %v729 = vand.u32 %v728, 4294901760
        %730 = vmatpush1.msra.mxu0 %v729
        %731 = vmatprep.subr.mxu0 0.0
        %v732 = vand.u32 %v204, 4294901760
        %v733 = vsub.f32 %v204, %v732
        %v734 = vand.u32 %v733, 4294901760
        %735 = vmatpush1.msra.mxu0 %v734
        %736 = vmatprep.subr.mxu0 0.0
        %v737 = vand.u32 %v203, 4294901760
        %v738 = vsub.f32 %v203, %v737
        %v739 = vand.u32 %v738, 4294901760
        %740 = vmatpush1.msra.mxu0 %v739
        %741 = vmatprep.subr.mxu0 0.0
        %742 = vmatpush2.msra.mxu0 0.0
        %743 = vmatprep.subr.mxu0 0.0
        %744 = vmatpush2.msra.mxu0 0.0
        %745 = vmatprep.subr.mxu0 0.0
        %746 = vmatpush2.msra.mxu0 0.0
        %747 = vmatprep.subr.mxu0 0.0
        %748 = vmatpush2.msra.mxu0 0.0
        %749 = vmatprep.subr.mxu0 0.0
        %750 = vmatpush2.msra.mxu0 0.0
        %751 = vmatprep.subr.mxu0 0.0
        %752 = vmatpush2.msra.mxu0 0.0
        %753 = vmatprep.subr.mxu0 0.0
        %754 = vmatpush2.msra.mxu0 0.0
        %755 = vmatprep.subr.mxu0 0.0
        %756 = vmatpush2.msra.mxu0 0.0
        %757 = vmatprep.subr.mxu0 0.0
        %758 = vmatpush2.msra.mxu0 0.0
        %759 = vmatprep.subr.mxu0 0.0
        %760 = vmatpush2.msra.mxu0 0.0
        %761 = vmatprep.subr.mxu0 0.0
        %762 = vmatpush2.msra.mxu0 0.0
        %763 = vmatprep.subr.mxu0 0.0
        %764 = vmatpush2.msra.mxu0 0.0
        %765 = vmatprep.subr.mxu0 0.0
        %766 = vmatpush2.msra.mxu0 0.0
        %767 = vmatprep.subr.mxu0 0.0
        %768 = vmatpush2.msra.mxu0 0.0
        %769 = vmatprep.subr.mxu0 0.0
        %770 = vmatpush2.msra.mxu0 0.0
        %771 = vmatprep.subr.mxu0 0.0
        %772 = vmatpush2.msra.mxu0 0.0
        %773 = vmatprep.mubr.f32.mxu0 0.0
        %v774 = vand.u32 %v252, 4294901760
        %775 = vmatmul.mubr.f32.gmra.mxu0 %v774
        %v776 = vpop.f32.mrf.mxu0
        %v777 = vadd.f32 %v666, %v776
        %v778 = vpop.f32.mrf.mxu0
        %779 = vmatprep.mubr.f32.mxu0 0.0
        %v780 = vand.u32 %v255, 4294901760
        %781 = vmatmul.mubr.f32.gmra.mxu0 %v780
        %v782 = vpop.f32.mrf.mxu0
        %v783 = vadd.f32 %v674, %v782
        %v784 = vpop.f32.mrf.mxu0
        %785 = vmatprep.mubr.f32.mxu0 0.0
        %v786 = vand.u32 %v258, 4294901760
        %787 = vmatmul.mubr.f32.gmra.mxu0 %v786
        %v788 = vpop.f32.mrf.mxu0
        %v789 = vadd.f32 %v682, %v788
        %v790 = vpop.f32.mrf.mxu0
        %791 = vdwg.mxu0
        %792 = vmatprep.subr.mxu0 0.0
        %793 = vmatpush1.msra.mxu0 0.0
        %794 = vmatprep.subr.mxu0 0.0
        %795 = vmatpush1.msra.mxu0 0.0
        %796 = vmatprep.subr.mxu0 0.0
        %797 = vmatpush1.msra.mxu0 0.0
        %798 = vmatprep.subr.mxu0 0.0
        %799 = vmatpush1.msra.mxu0 0.0
        %800 = vmatprep.subr.mxu0 0.0
        %801 = vmatpush1.msra.mxu0 0.0
        %802 = vmatprep.subr.mxu0 0.0
        %803 = vmatpush1.msra.mxu0 0.0
        %804 = vmatprep.subr.mxu0 0.0
        %805 = vmatpush1.msra.mxu0 0.0
        %806 = vmatprep.subr.mxu0 0.0
        %807 = vmatpush1.msra.mxu0 0.0
        %808 = vmatprep.subr.mxu0 0.0
        %v809 = vand.u32 %v210, 4294901760
        %810 = vmatpush1.msra.mxu0 %v809
        %811 = vmatprep.subr.mxu0 0.0
        %v812 = vand.u32 %v209, 4294901760
        %813 = vmatpush1.msra.mxu0 %v812
        %814 = vmatprep.subr.mxu0 0.0
        %v815 = vand.u32 %v208, 4294901760
        %816 = vmatpush1.msra.mxu0 %v815
        %817 = vmatprep.subr.mxu0 0.0
        %v818 = vand.u32 %v207, 4294901760
        %819 = vmatpush1.msra.mxu0 %v818
        %820 = vmatprep.subr.mxu0 0.0
        %v821 = vand.u32 %v206, 4294901760
        %822 = vmatpush1.msra.mxu0 %v821
        %823 = vmatprep.subr.mxu0 0.0
        %v824 = vand.u32 %v205, 4294901760
        %825 = vmatpush1.msra.mxu0 %v824
        %826 = vmatprep.subr.mxu0 0.0
        %v827 = vand.u32 %v204, 4294901760
        %828 = vmatpush1.msra.mxu0 %v827
        %829 = vmatprep.subr.mxu0 0.0
        %v830 = vand.u32 %v203, 4294901760
        %831 = vmatpush1.msra.mxu0 %v830
        %832 = vmatprep.subr.mxu0 0.0
        %833 = vmatpush2.msra.mxu0 0.0
        %834 = vmatprep.subr.mxu0 0.0
        %835 = vmatpush2.msra.mxu0 0.0
        %836 = vmatprep.subr.mxu0 0.0
        %837 = vmatpush2.msra.mxu0 0.0
        %838 = vmatprep.subr.mxu0 0.0
        %839 = vmatpush2.msra.mxu0 0.0
        %840 = vmatprep.subr.mxu0 0.0
        %841 = vmatpush2.msra.mxu0 0.0
        %842 = vmatprep.subr.mxu0 0.0
        %843 = vmatpush2.msra.mxu0 0.0
        %844 = vmatprep.subr.mxu0 0.0
        %845 = vmatpush2.msra.mxu0 0.0
        %846 = vmatprep.subr.mxu0 0.0
        %847 = vmatpush2.msra.mxu0 0.0
        %848 = vmatprep.subr.mxu0 0.0
        %849 = vmatpush2.msra.mxu0 0.0
        %850 = vmatprep.subr.mxu0 0.0
        %851 = vmatpush2.msra.mxu0 0.0
        %852 = vmatprep.subr.mxu0 0.0
        %853 = vmatpush2.msra.mxu0 0.0
        %854 = vmatprep.subr.mxu0 0.0
        %855 = vmatpush2.msra.mxu0 0.0
        %856 = vmatprep.subr.mxu0 0.0
        %857 = vmatpush2.msra.mxu0 0.0
        %858 = vmatprep.subr.mxu0 0.0
        %859 = vmatpush2.msra.mxu0 0.0
        %860 = vmatprep.subr.mxu0 0.0
        %861 = vmatpush2.msra.mxu0 0.0
        %862 = vmatprep.subr.mxu0 0.0
        %863 = vmatpush2.msra.mxu0 0.0
        %864 = vmatprep.mubr.f32.mxu0 0.0
        %v865 = vand.u32 %v252, 4294901760
        %866 = vmatmul.mubr.f32.gmra.mxu0 %v865
        %v867 = vpop.f32.mrf.mxu0
        %v868 = vadd.f32 %v777, %v867
        %v869 = vpop.f32.mrf.mxu0
        %870 = vmatprep.mubr.f32.mxu0 0.0
        %v871 = vand.u32 %v255, 4294901760
        %872 = vmatmul.mubr.f32.gmra.mxu0 %v871
        %v873 = vpop.f32.mrf.mxu0
        %v874 = vadd.f32 %v783, %v873
        %v875 = vpop.f32.mrf.mxu0
        %876 = vmatprep.mubr.f32.mxu0 0.0
        %v877 = vand.u32 %v258, 4294901760
        %878 = vmatmul.mubr.f32.gmra.mxu0 %v877
        %v879 = vpop.f32.mrf.mxu0
        %v880 = vadd.f32 %v789, %v879
        %v881 = vpop.f32.mrf.mxu0
        %882 = vdwg.mxu0
        %883 = vmax.xlane.f32.xlu0 %v868
        %v884 = vpop.xlane.xlu0 %883
        %885 = vmax.xlane.f32.xlu0 %v874
        %v886 = vpop.xlane.xlu0 %885
        %vm887 = vcmask 1043456
        %v888 = vsel %vm887, %v880, -inf
        %889 = vmax.xlane.f32.xlu0 %v888
        %v890 = vpop.xlane.xlu0 %889
        %v891 = vsub.f32 %v868, %v884
        %v892 = vsub.f32 %v874, %v886
        %v893 = vsub.f32 %v880, %v890
        %v894 = vmul.f32 %v891, 1.442695
        %v895 = vpow.pop %v894
        %v896 = vmul.f32 %v892, 1.442695
        %v897 = vpow.pop %v896
        %v898 = vmul.f32 %v893, 1.442695
        %v899 = vpow.pop %v898
        %900 = vadd.xlane.f32.xlu0 %v895
        %v901 = vpop.xlane.xlu0 %900
        %902 = vadd.xlane.f32.xlu0 %v897
        %v903 = vpop.xlane.xlu0 %902
        %v904 = vsel %vm887, %v899, 0.0
        %905 = vadd.xlane.f32.xlu0 %v904
        %v906 = vpop.xlane.xlu0 %905
        %v907 = vrcp.pop %v901
        %v908 = vmul.f32 %v895, %v907
        %v909 = vrcp.pop %v903
        %v910 = vmul.f32 %v897, %v909
        %v911 = vrcp.pop %v906
        %v912 = vmul.f32 %v899, %v911
        %913 = vst [vmem:[%s185] sm:$0xff] %v908
        %914 = vst [vmem:[%s185 + $0x8] sm:$0xff] %v910
        %915 = vst [vmem:[%s185 + $0x10] sm:$0xf] %v912
        %s916 = sand.u32 %s109, 1
        %s917 = scalar_lea.sflag [#allocation3], %s916
        %s918 = sand.u32 %s109, 1
        %s919 = smul.addr %s918, 24
        %s920 = scalar_lea.vmem [#allocation2], %s919
        // Predicated region
        $region33: #{multihead_forward.1} parent=31 // pred_check
          %p921 = pneg %p119
        $region34: #{multihead_forward.1} parent=31 // pred_check_branch
          %923 = sbr.rel (%p921) target = $region36
        $region35: #{multihead_forward.1} parent=31 // pred_region
          %s924 = smul.u32 3, %s22
          %s926 = ssub.s32 384, 384
          %927 = vsyncadd %s917, %s926
          %s928 = smul.addr %s21, 3
          %s929 = sadd.s32 %s924, %s928
          %s930 = smul.addr %s929, 128
          %s931 = scalar_lea.hbm %s3, %s930
          %s932 = sshll.u32 %s920, 4
          %s933 = int_to_ptr.vmem [resolvable:$true] %s932
          %938 = dma.vmem_to_hbm [thread:$0]  %s933, 384, %s931, %s917, 128, 128, 8
        $region36: #{multihead_forward.1} parent=31 // pred_fallthru
          _
      $region32: #{multihead_forward.1} parent=5 // pred_fallthru
        _
      %p939 = scmp.le.s32.totalorder 2, %s12
      // Predicated region
      $region37: #{multihead_forward.1} parent=5 // pred_check
        %p940 = pneg %p939
      $region38: #{multihead_forward.1} parent=5 // pred_check_branch
        %942 = sbr.rel (%p940) target = $region40
      $region39: #{multihead_forward.1} parent=5 // pred_region
        %s943 = ssub.s32 %s12, 2
        // Predicated region
        $region41: #{multihead_forward.1} parent=39 // pred_check
          %p944 = pneg %p125
        $region42: #{multihead_forward.1} parent=39 // pred_check_branch
          %946 = sbr.rel (%p944) target = $region44
        $region43: #{multihead_forward.1} parent=39 // pred_region
          %s947 = sand.u32 %s110, 1
          %s948 = scalar_lea.sflag [#allocation3], %s947
          %s949 = sand.u32 %s110, 1
          %s950 = smul.addr %s949, 24
          %s951 = scalar_lea.vmem [#allocation2], %s950
          %952 = dma.done %s948, 384
        $region44: #{multihead_forward.1} parent=39 // pred_fallthru
          _
      $region40: #{multihead_forward.1} parent=5 // pred_fallthru
        _
    $region6: #{multihead_forward.1} parent=1 // loop_footer
      %s16 = sadd.s32 1, %s12
    $region7: #{multihead_forward.1} parent=1 // loop_footer_branch
      %11 = sbr.rel target = $region3
    $region8: #{multihead_forward.1} parent=1 // loop_exit
      _
    %953 = vsyncpa [#allocation3], 1
    %s954 = scalar_lea.sflag [#allocation3], 1
    %955 = vsyncpa %s954, 1

</llo_original>
